<compile_context>
chip_gen: v7x
topology: tpu7x:2x2x1
jax: 0.10.0
libtpu: 0.0.40
codegen_flags: <defaults>
</compile_context>

<pallas_src>
import jax
import jax.numpy as jnp
import numpy as np
from jax import lax
from jax.experimental import pallas as pl
from jax.experimental.pallas import tpu as pltpu

B = 2          # batch
L_IN = 26      # input length (gives 13 after MaxPool1d(k=1, s=2))
L_POOL = 13    # length after pooling -> matches Linear(13, 1)
L_AUG = L_IN + 1  # +1 ones column folds the bias into the matmul
C1 = 10        # conv channels
NCLASS = 2     # Linear(10, 2) output


def net_kernel(x_ref, at_ref, out_ref):
    # x_ref: (B, L_AUG) with trailing ones column, at_ref: (NCLASS, L_AUG)
    # lane-dense, out_ref: (B, NCLASS).
    # Entire fused network = one dot (bias folded in) + 2-class softmax.
    logits = lax.dot_general(
        x_ref[...], at_ref[...],
        dimension_numbers=(((1,), (1,)), ((), ())),
        preferred_element_type=jnp.float32)            # (B, NCLASS)

    # F.softmax over 2 classes, exact closed form (no XLU reductions, exact
    # divide instead of the approximate reciprocal).
    d = logits[:, 1:2] - logits[:, 0:1]                 # (B, 1)
    p1 = 1.0 / (1.0 + jnp.exp(-d))
    out_ref[...] = jnp.concatenate([1.0 - p1, p1], axis=-1)


def fuse_affine(params):
    """Collapse conv1 -> pool(s=2) -> conv2 -> liner1 -> liner2 into A_aug^T.

    logits[b, k] = sum_l x_aug[b, l] * A_aug[l, k], where x_aug has a trailing
    ones column and A_aug's last row carries the fused bias.  Returned
    transposed (NCLASS, L_AUG) so it DMAs as one contiguous lane-dense vreg.
    Weight-only algebra: run once per parameter set (not per forward).
    """
    w1, b1, w2, b2, w3, b3, w4, b4 = params
    w1v = w1.reshape(C1)                 # conv1: h1[o,l] = w1v[o]*x[l] + b1[o]
    w2m = w2.reshape(C1, C1)             # conv2 mixes channels
    u = w2m @ w1v                        # (C1,)  per-channel gain on x[2j]
    v = w2m @ b1 + b2                    # (C1,)  per-channel bias
    w3v = w3.reshape(L_POOL)             # liner1 weights over the 13 positions
    g = w4 @ u                           # (NCLASS,) class gain on sum_j w3v[j]*x[2j]
    d = v * jnp.sum(w3v) + b3[0]         # (C1,)  channel bias after liner1
    c = w4 @ d + b4                      # (NCLASS,) fused bias
    # MaxPool1d(k=1, s=2) == keep even positions: scatter w3v onto even slots.
    m = jnp.zeros((L_IN,), jnp.float32).at[::2].set(w3v)   # (L_IN,)
    A = jnp.outer(m, g)                  # (L_IN, NCLASS)
    A_aug = jnp.concatenate([A, c[None, :]], axis=0)        # (L_AUG, NCLASS)
    return A_aug.T                       # (NCLASS, L_AUG) lane-dense


@jax.jit
def net_forward(x, a_t):
    """x: (B, 1, L_IN) float32 in PyTorch NCL layout; a_t: (NCLASS, L_AUG).
    Returns (B, NCLASS) softmax probabilities."""
    batch = x.shape[0]
    x_flat = x.reshape(batch, L_IN).astype(jnp.float32)  # length axis on lanes
    ones = jnp.ones((batch, 1), jnp.float32)
    x_aug = jnp.concatenate([x_flat, ones], axis=-1)      # (B, L_AUG)

    vmem = lambda: pl.BlockSpec(memory_space=pltpu.MemorySpace.VMEM)

    # Grid-less single invocation: whole problem is a few hundred bytes, far
    # below any VMEM limit on v5e/v6e/v7x.  (A parallel batch grid axis would
    # only matter for v7x's second TensorCore at much larger batch sizes.)
    out = pl.pallas_call(
        net_kernel,
        out_shape=jax.ShapeDtypeStruct((batch, NCLASS), jnp.float32),
        in_specs=[vmem(), vmem()],       # 2 tiny whole-array VMEM blocks
        out_specs=vmem(),                # single (B, NCLASS) store
    )(x_aug, a_t)
    return out


def net_reference(x, params):
    """Pure-JAX replica of the torch forward (un-fused), for verification."""
    w1, b1, w2, b2, w3, b3, w4, b4 = params
    h = jnp.einsum('oci,bcl->bol', w1, x) + b1[None, :, None]   # conv1 (k=1)
    h = h[:, :, ::2]                                            # maxpool k=1 s=2
    h = jnp.einsum('oci,bcl->bol', w2, h) + b2[None, :, None]   # conv2 (k=1)
    # maxpool k=1 s=1 -> identity
    h = h @ w3.T + b3                                           # liner1 -> (B, 10, 1)
    h = h[:, :, 0]                                              # squeeze(2)
    h = h @ w4.T + b4                                           # liner2 -> (B, 2)
    return jax.nn.softmax(h, axis=1)


def init_params(key):
    ks = jax.random.split(key, 8)
    u = lambda k, shape, fan_in: jax.random.uniform(
        k, shape, jnp.float32, -1.0 / np.sqrt(fan_in), 1.0 / np.sqrt(fan_in))
    w1 = u(ks[0], (C1, 1, 1), 1)        # Conv1d(1, 10, 1)
    b1 = u(ks[1], (C1,), 1)
    w2 = u(ks[2], (C1, C1, 1), C1)      # Conv1d(10, 10, 1)
    b2 = u(ks[3], (C1,), C1)
    w3 = u(ks[4], (1, L_POOL), L_POOL)  # Linear(13, 1)
    b3 = u(ks[5], (1,), L_POOL)
    w4 = u(ks[6], (NCLASS, C1), C1)     # Linear(10, 2)
    b4 = u(ks[7], (NCLASS,), C1)
    return (w1, b1, w2, b2, w3, b3, w4, b4)


if __name__ == "__main__":
    key = jax.random.PRNGKey(0)
    pkey, xkey = jax.random.split(key)
    params = init_params(pkey)
    x = jax.random.normal(xkey, (B, 1, L_IN), jnp.float32)   # NCL, like PyTorch

    a_t = fuse_affine(params)            # weight-only algebra, computed once
    out = net_forward(x, a_t)
    out = jax.block_until_ready(out)

    ref = net_reference(x, params)
    # Tolerance covers fp32 compute (torch module is float64) and the fused
    # summation-order change; the softmax itself is now exact.
    np.testing.assert_allclose(np.asarray(out), np.asarray(ref),
                               atol=5e-4, rtol=5e-4)

    print("KERNEL_OK")
</pallas_src>

<mosaic_0001>
module attributes {stable_mosaic.version = 11 : i64} {
  func.func @net_kernel(%arg0: memref<2x27xf32, #tpu.memory_space<vmem>>, %arg1: memref<2x27xf32, #tpu.memory_space<vmem>>, %arg2: memref<2x2xf32, #tpu.memory_space<vmem>>) attributes {dimension_semantics = [], scalar_prefetch = 0 : i64, scratch_operands = 0 : i64, tpu.core_type = #tpu.core_type<tc>} {
    %c0 = arith.constant 0 : index
    %c0_0 = arith.constant 0 : index
    %0 = vector.load %arg0[%c0, %c0_0] : memref<2x27xf32, #tpu.memory_space<vmem>>, vector<2x27xf32>
    %c0_1 = arith.constant 0 : index
    %c0_2 = arith.constant 0 : index
    %1 = vector.load %arg1[%c0_1, %c0_2] : memref<2x27xf32, #tpu.memory_space<vmem>>, vector<2x27xf32>
    %cst = arith.constant dense<0.000000e+00> : vector<2x2xf32>
    %2 = tpu.matmul %0, %1, %cst {dimension_numbers = #tpu.dot_dimension_numbers<[1], [1], [0], [0], [0, 0, 1, 0], [], []>} : vector<2x27xf32>, vector<2x27xf32>, vector<2x2xf32> -> vector<2x2xf32>
    %3 = vector.extract_strided_slice %2 {offsets = [0, 1], sizes = [2, 1], strides = [1, 1]} : vector<2x2xf32> to vector<2x1xf32>
    %4 = vector.extract_strided_slice %2 {offsets = [0, 0], sizes = [2, 1], strides = [1, 1]} : vector<2x2xf32> to vector<2x1xf32>
    %5 = arith.subf %3, %4 : vector<2x1xf32>
    %cst_3 = arith.constant 0.000000e+00 : f32
    %6 = vector.broadcast %cst_3 : f32 to vector<2x1xf32>
    %7 = arith.subf %6, %5 : vector<2x1xf32>
    %8 = math.exp %7 : vector<2x1xf32>
    %cst_4 = arith.constant 1.000000e+00 : f32
    %9 = vector.broadcast %cst_4 : f32 to vector<2x1xf32>
    %10 = arith.addf %9, %8 : vector<2x1xf32>
    %cst_5 = arith.constant 1.000000e+00 : f32
    %11 = vector.broadcast %cst_5 : f32 to vector<2x1xf32>
    %12 = arith.divf %11, %10 : vector<2x1xf32>
    %cst_6 = arith.constant 1.000000e+00 : f32
    %13 = vector.broadcast %cst_6 : f32 to vector<2x1xf32>
    %14 = arith.subf %13, %12 : vector<2x1xf32>
    %15 = tpu.concatenate %14, %12 in 1 : vector<2x1xf32>, vector<2x1xf32> -> vector<2x2xf32>
    %c0_7 = arith.constant 0 : index
    %c0_8 = arith.constant 0 : index
    %16 = vector.load %arg2[%c0_7, %c0_8] : memref<2x2xf32, #tpu.memory_space<vmem>>, vector<2x2xf32>
    tpu.vector_store %arg2[%c0_7, %c0_8], %15 {strides = array<i32>} : memref<2x2xf32, #tpu.memory_space<vmem>>, vector<2x2xf32>,
    return
  }
}

</mosaic_0001>

<llo_original>
// kernel: net_forward.1
$region0: #{net_forward.1}
  #allocation0 [shape = 'u32[]', space=smem, size = 0x4, offset = 0x4, fixed_abs, tag = 'smem constant byte address 0x4 - core index']
  #allocation1 [shape = 'u32[144,128]{1,0:T(1,128)}', space=vmem, size = 0x12000, scoped, tag = 'internal scratch']
  %s0 = inlined_call_operand.vmem [shape: f32[2,27], index: 0, kind: input, shape index: {}]
  %s1 = inlined_call_operand.vmem [shape: f32[2,27], index: 1, kind: input, shape index: {}]
  %s2 = inlined_call_operand.hbm [shape: f32[2,2], index: 2, kind: output, shape index: {}]
  %s3 = sld [smem:[#allocation0]]
  $region18: #{net_forward.1} parent=0
    _
  %s5 = ssub.s32 1, %s3
  %s6 = scalar_select 0, %s5, %s3
  $region1: #{net_forward.1} parent=0
    #allocation2 [shape = 'u8[1024]{0}', space=vmem, size = 0x400, scoped, tag = 'output window, operand 0, single buffered']
    #allocation3 [shape = 's32[1]{0}', space=sflag, size = 0x4, scoped, tag = 'scoped memory for net_forward.1']
    %7 = vsyncpa [#allocation3], 0
    // Predicated region
    $region2: #{net_forward.1} parent=1 // pred_check
      _
    $region3: #{net_forward.1} parent=1 // pred_check_branch
      %9 = sbr.rel (0) target = $region5
    $region4: #{net_forward.1} parent=1 // pred_region
      _
    $region5: #{net_forward.1} parent=1 // pred_fallthru
      _
    // Predicated region
    $region6: #{net_forward.1} parent=1 // pred_check
      _
    $region7: #{net_forward.1} parent=1 // pred_check_branch
      %11 = sbr.rel (0) target = $region9
    $region8: #{net_forward.1} parent=1 // pred_region
      _
    $region9: #{net_forward.1} parent=1 // pred_fallthru
      _
    %v12 = vld [vmem:[%s0] sm:$0x3]
    %v13 = vld [vmem:[%s1] sm:$0x3]
    %vm14 = vcmask 220160
    %v16 = vsel %vm14, %v12, 0
    %v19 = vsel %vm14, %v13, 0
    %21 = vmatprep.subr.mxu0 0.0
    %22 = vmatpush1.xpose.msra.mxu0 %v19
    %23 = vmatprep.subr.mxu0 0.0
    %24 = vmatpush1.xpose.msra.mxu0 0.0
    %25 = vmatprep.subr.mxu0 0.0
    %26 = vmatpush1.xpose.msra.mxu0 0.0
    %27 = vmatprep.subr.mxu0 0.0
    %28 = vmatpush1.xpose.msra.mxu0 0.0
    %29 = vmatprep.subr.mxu0 0.0
    %30 = vmatpush1.xpose.msra.mxu0 0.0
    %31 = vmatprep.subr.mxu0 0.0
    %32 = vmatpush1.xpose.msra.mxu0 0.0
    %33 = vmatprep.subr.mxu0 0.0
    %34 = vmatpush1.xpose.msra.mxu0 0.0
    %35 = vmatprep.subr.mxu0 0.0
    %36 = vmatpush1.xpose.msra.mxu0 0.0
    %37 = vmatprep.subr.mxu0 0.0
    %38 = vmatpush1.xpose.msra.mxu0 0.0
    %39 = vmatprep.subr.mxu0 0.0
    %40 = vmatpush1.xpose.msra.mxu0 0.0
    %41 = vmatprep.subr.mxu0 0.0
    %42 = vmatpush1.xpose.msra.mxu0 0.0
    %43 = vmatprep.subr.mxu0 0.0
    %44 = vmatpush1.xpose.msra.mxu0 0.0
    %45 = vmatprep.subr.mxu0 0.0
    %46 = vmatpush1.xpose.msra.mxu0 0.0
    %47 = vmatprep.subr.mxu0 0.0
    %48 = vmatpush1.xpose.msra.mxu0 0.0
    %49 = vmatprep.subr.mxu0 0.0
    %50 = vmatpush1.xpose.msra.mxu0 0.0
    %51 = vmatprep.subr.mxu0 0.0
    %52 = vmatpush1.xpose.msra.mxu0 0.0
    %53 = vmatprep.subr.mxu0 0.0
    %54 = vmatpush1.xpose.msra.mxu0 0.0
    %55 = vmatprep.subr.mxu0 0.0
    %56 = vmatpush1.xpose.msra.mxu0 0.0
    %57 = vmatprep.subr.mxu0 0.0
    %58 = vmatpush1.xpose.msra.mxu0 0.0
    %59 = vmatprep.subr.mxu0 0.0
    %60 = vmatpush1.xpose.msra.mxu0 0.0
    %61 = vmatprep.subr.mxu0 0.0
    %62 = vmatpush1.xpose.msra.mxu0 0.0
    %63 = vmatprep.subr.mxu0 0.0
    %64 = vmatpush1.xpose.msra.mxu0 0.0
    %65 = vmatprep.subr.mxu0 0.0
    %66 = vmatpush1.xpose.msra.mxu0 0.0
    %67 = vmatprep.subr.mxu0 0.0
    %68 = vmatpush1.xpose.msra.mxu0 0.0
    %69 = vmatprep.subr.mxu0 0.0
    %70 = vmatpush1.xpose.msra.mxu0 0.0
    %71 = vmatprep.subr.mxu0 0.0
    %72 = vmatpush1.xpose.msra.mxu0 0.0
    %73 = vmatprep.subr.mxu0 0.0
    %74 = vmatpush1.xpose.msra.mxu0 0.0
    %75 = vmatprep.subr.mxu0 0.0
    %76 = vmatpush1.xpose.msra.mxu0 0.0
    %77 = vmatprep.subr.mxu0 0.0
    %78 = vmatpush1.xpose.msra.mxu0 0.0
    %79 = vmatprep.subr.mxu0 0.0
    %80 = vmatpush1.xpose.msra.mxu0 0.0
    %81 = vmatprep.subr.mxu0 0.0
    %82 = vmatpush1.xpose.msra.mxu0 0.0
    %83 = vmatprep.subr.mxu0 0.0
    %84 = vmatpush1.xpose.msra.mxu0 0.0
    %85 = vmatprep.mubr.f32.mxu0 0.0
    %86 = vmatmul.mubr.f32.gmra.mrb[0].mxu0 %v16
    %v87 = vpop.f32.mrb[0].mxu0
    %v88 = vadd.f32 0.0, %v87
    %v89 = vpop.f32.mrb[0].mxu0
    %90 = vdwg.mxu0
    %92 = vrot.lane.b32.xlu0 %v88, 1
    %v93 = vpop.permute.xlu0 %92
    %v95 = vsub.f32 %v88, %v93
    %v96 = vsub.f32 0.0, %v95
    %v97 = vmul.f32 %v96, 1.442695
    %v98 = vpow.pop %v97
    %v99 = vadd.f32 %v98, 1.0
    %v100 = vrcp.pop %v99
    %v101 = vmul.f32 1.0, %v100
    %v102 = vsub.f32 1.0, %v101
    %104 = vrot.lane.b32.xlu0 %v102, 127
    %v105 = vpop.permute.xlu0 %104
    %vm107 = vcmask 7168
    %v108 = vsel %vm107, %v105, %v101
    %vm109 = vcmask 9216
    %110 = vst.msk [vmem:[#allocation2] sm:$0x3] %vm109, %v108
    // Predicated region
    $region10: #{net_forward.1} parent=1 // pred_check
      _
    $region11: #{net_forward.1} parent=1 // pred_check_branch
      %112 = sbr.rel (0) target = $region13
    $region12: #{net_forward.1} parent=1 // pred_region
      %s114 = ssub.s32 32, 32
      %115 = vsyncadd [#allocation3], %s114
      %s117 = sshll.u32 [#allocation2], 4
      %s118 = int_to_ptr.vmem [resolvable:$true] %s117
      %120 = dma.vmem_to_hbm [thread:$0]  %s118, 32, %s2, [#allocation3]
    $region13: #{net_forward.1} parent=1 // pred_fallthru
      _
    // Predicated region
    $region14: #{net_forward.1} parent=1 // pred_check
      _
    $region15: #{net_forward.1} parent=1 // pred_check_branch
      %122 = sbr.rel (0) target = $region17
    $region16: #{net_forward.1} parent=1 // pred_region
      %123 = dma.done [#allocation3], 32
    $region17: #{net_forward.1} parent=1 // pred_fallthru
      _
    %124 = vsyncpa [#allocation3], 1

</llo_original>
